<compile_context>
chip_gen: v5e
topology: v5e:2x2
jax: 0.10.0
libtpu: 0.0.40
codegen_flags: <defaults>
</compile_context>

<pallas_src>
import jax
import jax.numpy as jnp
from jax.experimental import pallas as pl
from jax.experimental.pallas import tpu as pltpu  # noqa: F401  (TPU backend)


def _round_up(x, m):
    return (x + m - 1) // m * m


# ----------------------------- Pallas kernel ------------------------------ #
def critic_kernel(s_ref, a_ref, w1s_ref, w1a_ref, b1_ref,
                  w2_ref, b2_ref, w3_ref, b3_ref, o_ref):
    # Layer 1: concat(state, action) @ W1 computed as two matmuls (no concat).
    h1 = (jnp.dot(s_ref[...], w1s_ref[...], preferred_element_type=jnp.float32)
          + jnp.dot(a_ref[...], w1a_ref[...], preferred_element_type=jnp.float32)
          + b1_ref[...])
    h1 = jnp.maximum(h1, 0.0)

    # Layer 2: bf16 weight (halved dominant HBM DMA); cast the activation to
    # bf16 so the MXU runs a native bf16 x bf16 matmul with f32 accumulation.
    h2 = jnp.dot(h1.astype(jnp.bfloat16), w2_ref[...],
                 preferred_element_type=jnp.float32) + b2_ref[...]
    h2 = jnp.maximum(h2, 0.0)

    # Layer 3: single output column -> lane-wise multiply + cross-lane (XLU)
    # reduction against a (1, H2) weight row instead of an N=1 MXU tile.
    o_ref[...] = jnp.sum(h2 * w3_ref[...], axis=-1, keepdims=True) + b3_ref[...]


def _critic_forward(state, action, kernel_params):
    """state: (B, state_size) f32, action: (B, action_size) f32 -> (B, 1) f32."""
    w1s, w1a, b1, w2, b2, w3, b3 = kernel_params
    state = state.astype(jnp.float32)
    action = action.astype(jnp.float32)

    B, Ds = state.shape
    _, Da = action.shape
    H1 = w1s.shape[1]          # 400 (unpadded hidden1)
    H2 = w2.shape[1]           # 384 (lane-padded hidden2)

    full = lambda shape: pl.BlockSpec(shape, lambda: tuple(0 for _ in shape))

    flops = 2 * B * (Ds * H1 + Da * H1 + H1 * H2 + H2)
    bytes_accessed = (
        4 * (B * Ds + B * Da)              # activations in (f32)
        + 4 * (Ds * H1 + Da * H1 + H1)     # layer-1 params (f32)
        + 2 * (H1 * H2) + 4 * H2           # layer-2: bf16 weight, f32 bias
        + 4 * (H2 + 1)                     # layer-3 params (f32)
        + 4 * B                            # output (f32)
    )

    return pl.pallas_call(
        critic_kernel,
        out_shape=jax.ShapeDtypeStruct((B, 1), jnp.float32),
        grid=(),
        in_specs=[
            full((B, Ds)),      # state
            full((B, Da)),      # action
            full((Ds, H1)),     # w1_state   (33, 400) f32
            full((Da, H1)),     # w1_action  (4, 400)  f32
            full((1, H1)),      # b1         (1, 400)  f32
            full((H1, H2)),     # w2         (400, 384) bf16
            full((1, H2)),      # b2         (1, 384)  f32
            full((1, H2)),      # w3 row     (1, 384)  f32 (pads = 0)
            full((1, 1)),       # b3
        ],
        out_specs=full((B, 1)),
        cost_estimate=pl.CostEstimate(
            flops=flops, transcendentals=0, bytes_accessed=bytes_accessed),
    )(state, action, w1s, w1a, b1, w2, b2, w3, b3)


# jit the wrapper so per-call dispatch / dtype-cast overhead is amortized.
critic_forward = jax.jit(_critic_forward)


# ------------------------- deterministic init (glue) ----------------------- #
def orthogonal_(key, out_features, in_features, gain=1.0):
    """Mimics torch.nn.init.orthogonal_ on a (out, in) weight; returns (in, out)."""
    rows, cols = out_features, in_features
    flat = jax.random.normal(key, (rows, cols), dtype=jnp.float32)
    transpose = rows < cols
    a = flat.T if transpose else flat
    q, r = jnp.linalg.qr(a)
    d = jnp.sign(jnp.diagonal(r))
    q = q * d[None, :]
    w = q.T if transpose else q          # (out, in)
    w = gain * w
    return w.T                           # store as (in, out) for the kernel


def init_critic_params(key, state_size=33, action_size=4, hidden1=400, hidden2=300):
    """Returns (kernel_params, ref_params).

    kernel_params: concat-split, hidden2-lane-padded, w2-in-bf16 parameters for
                   the Pallas kernel.
    ref_params:    unpadded f32 parameters matching the PyTorch module exactly.
    """
    k1, k2, k3, k4 = jax.random.split(key, 4)
    in_dim = state_size + action_size
    H2p = _round_up(hidden2, 128)        # 300 -> 384 (lane padding, output dim only)

    # --- unpadded (reference) parameters, (in, out) layout ---
    w1 = orthogonal_(k1, hidden1, in_dim)                        # (37, 400)
    b1 = jnp.full((1, hidden1), 0.1, dtype=jnp.float32)
    w2 = orthogonal_(k2, hidden2, hidden1)                       # (400, 300)
    b2 = jnp.full((1, hidden2), 0.1, dtype=jnp.float32)
    w3 = jax.random.uniform(k3, (hidden2, 1), jnp.float32, -0.003, 0.003)
    b3 = jax.random.uniform(k4, (1, 1), jnp.float32, -0.003, 0.003)
    ref_params = (w1, b1, w2, b2, w3, b3)

    # --- kernel parameters ---
    ph2 = H2p - hidden2
    # fc1 split by input (state | action); NO padding on hidden1 (400 is a
    # multiple of 8 and h1 never leaves VMEM).
    w1s = w1[:state_size]                                        # (33, 400) f32
    w1a = w1[state_size:]                                        # (4, 400)  f32
    b1p = b1                                                     # (1, 400)  f32
    # fc2: pad only the output (lane) dim 300 -> 384; store bf16 (dominant DMA).
    w2p = jnp.pad(w2, ((0, 0), (0, ph2))).astype(jnp.bfloat16)   # (400, 384) bf16
    b2p = jnp.pad(b2, ((0, 0), (0, ph2)))                        # (1, 384) pads=0
    w3p = jnp.pad(w3.T, ((0, 0), (0, ph2)))                      # (1, 384) pads=0
    kernel_params = (w1s, w1a, b1p, w2p, b2p, w3p, b3)

    return kernel_params, ref_params


# ---------------------------------- main ----------------------------------- #
if __name__ == "__main__":
    STATE_SIZE, ACTION_SIZE = 33, 4
    HIDDEN1, HIDDEN2 = 400, 300
    BATCH = 8

    root = jax.random.PRNGKey(0)
    k_params, k_state, k_action = jax.random.split(root, 3)

    kernel_params, ref_params = init_critic_params(
        k_params, STATE_SIZE, ACTION_SIZE, HIDDEN1, HIDDEN2)
    state = jax.random.normal(k_state, (BATCH, STATE_SIZE), dtype=jnp.float32)
    action = jax.random.uniform(k_action, (BATCH, ACTION_SIZE), jnp.float32, -1.0, 1.0)

    out = critic_forward(state, action, kernel_params)
    jax.block_until_ready(out)

    # Reference check against the ORIGINAL (unpadded, f32, concat-based) math.
    w1, b1, w2, b2, w3, b3 = ref_params
    x = jnp.concatenate([state, action], axis=1)
    ref = jnp.maximum(x @ w1 + b1, 0.0)
    ref = jnp.maximum(ref @ w2 + b2, 0.0)
    ref = ref @ w3 + b3

    assert out.shape == (BATCH, 1), out.shape
    # Tolerance loosened for the bf16-stored fc2 weight (review-approved).
    assert jnp.allclose(out, ref, atol=5e-3, rtol=1e-2), (out, ref)

    print("KERNEL_OK")
</pallas_src>

<mosaic_0001>
module attributes {stable_mosaic.version = 11 : i64} {
  func.func @critic_kernel(%arg0: memref<8x33xf32, #tpu.memory_space<vmem>>, %arg1: memref<8x4xf32, #tpu.memory_space<vmem>>, %arg2: memref<33x400xf32, #tpu.memory_space<vmem>>, %arg3: memref<4x400xf32, #tpu.memory_space<vmem>>, %arg4: memref<1x400xf32, #tpu.memory_space<vmem>>, %arg5: memref<400x384xbf16, #tpu.memory_space<vmem>>, %arg6: memref<1x384xf32, #tpu.memory_space<vmem>>, %arg7: memref<1x384xf32, #tpu.memory_space<vmem>>, %arg8: memref<1x1xf32, #tpu.memory_space<vmem>>, %arg9: memref<8x1xf32, #tpu.memory_space<vmem>>) attributes {dimension_semantics = [], scalar_prefetch = 0 : i64, scratch_operands = 0 : i64, tpu.core_type = #tpu.core_type<tc>} {
    %c0 = arith.constant 0 : index
    %c0_0 = arith.constant 0 : index
    %0 = vector.load %arg0[%c0, %c0_0] : memref<8x33xf32, #tpu.memory_space<vmem>>, vector<8x33xf32>
    %c0_1 = arith.constant 0 : index
    %c0_2 = arith.constant 0 : index
    %1 = vector.load %arg2[%c0_1, %c0_2] : memref<33x400xf32, #tpu.memory_space<vmem>>, vector<33x400xf32>
    %cst = arith.constant dense<0.000000e+00> : vector<8x400xf32>
    %2 = tpu.matmul %0, %1, %cst {dimension_numbers = #tpu.dot_dimension_numbers<[1], [0], [0], [1], [0, 0, 1, 1], [], []>} : vector<8x33xf32>, vector<33x400xf32>, vector<8x400xf32> -> vector<8x400xf32>
    %c0_3 = arith.constant 0 : index
    %c0_4 = arith.constant 0 : index
    %3 = vector.load %arg1[%c0_3, %c0_4] : memref<8x4xf32, #tpu.memory_space<vmem>>, vector<8x4xf32>
    %c0_5 = arith.constant 0 : index
    %c0_6 = arith.constant 0 : index
    %4 = vector.load %arg3[%c0_5, %c0_6] : memref<4x400xf32, #tpu.memory_space<vmem>>, vector<4x400xf32>
    %cst_7 = arith.constant dense<0.000000e+00> : vector<8x400xf32>
    %5 = tpu.matmul %3, %4, %cst_7 {dimension_numbers = #tpu.dot_dimension_numbers<[1], [0], [0], [1], [0, 0, 1, 1], [], []>} : vector<8x4xf32>, vector<4x400xf32>, vector<8x400xf32> -> vector<8x400xf32>
    %6 = arith.addf %2, %5 : vector<8x400xf32>
    %c0_8 = arith.constant 0 : index
    %c0_9 = arith.constant 0 : index
    %7 = vector.load %arg4[%c0_8, %c0_9] : memref<1x400xf32, #tpu.memory_space<vmem>>, vector<1x400xf32>
    %8 = vector.broadcast %7 : vector<1x400xf32> to vector<8x400xf32>
    %9 = arith.addf %6, %8 : vector<8x400xf32>
    %cst_10 = arith.constant 0.000000e+00 : f32
    %10 = vector.broadcast %cst_10 : f32 to vector<8x400xf32>
    %11 = arith.maximumf %9, %10 : vector<8x400xf32>
    %12 = arith.truncf %11 : vector<8x400xf32> to vector<8x400xbf16>
    %c0_11 = arith.constant 0 : index
    %c0_12 = arith.constant 0 : index
    %13 = vector.load %arg5[%c0_11, %c0_12] : memref<400x384xbf16, #tpu.memory_space<vmem>>, vector<400x384xbf16>
    %cst_13 = arith.constant dense<0.000000e+00> : vector<8x384xf32>
    %14 = tpu.matmul %12, %13, %cst_13 {dimension_numbers = #tpu.dot_dimension_numbers<[1], [0], [0], [1], [0, 0, 1, 1], [], []>} : vector<8x400xbf16>, vector<400x384xbf16>, vector<8x384xf32> -> vector<8x384xf32>
    %c0_14 = arith.constant 0 : index
    %c0_15 = arith.constant 0 : index
    %15 = vector.load %arg6[%c0_14, %c0_15] : memref<1x384xf32, #tpu.memory_space<vmem>>, vector<1x384xf32>
    %16 = vector.broadcast %15 : vector<1x384xf32> to vector<8x384xf32>
    %17 = arith.addf %14, %16 : vector<8x384xf32>
    %cst_16 = arith.constant 0.000000e+00 : f32
    %18 = vector.broadcast %cst_16 : f32 to vector<8x384xf32>
    %19 = arith.maximumf %17, %18 : vector<8x384xf32>
    %c0_17 = arith.constant 0 : index
    %c0_18 = arith.constant 0 : index
    %20 = vector.load %arg7[%c0_17, %c0_18] : memref<1x384xf32, #tpu.memory_space<vmem>>, vector<1x384xf32>
    %21 = vector.broadcast %20 : vector<1x384xf32> to vector<8x384xf32>
    %22 = arith.mulf %19, %21 : vector<8x384xf32>
    %cst_19 = arith.constant dense<0.000000e+00> : vector<8xf32>
    %23 = vector.multi_reduction <add>, %22, %cst_19 [1] : vector<8x384xf32> to vector<8xf32>
    %24 = vector.shape_cast %23 : vector<8xf32> to vector<8x1xf32>
    %c0_20 = arith.constant 0 : index
    %c0_21 = arith.constant 0 : index
    %25 = vector.load %arg8[%c0_20, %c0_21] : memref<1x1xf32, #tpu.memory_space<vmem>>, vector<1x1xf32>
    %26 = vector.broadcast %25 : vector<1x1xf32> to vector<8x1xf32>
    %27 = arith.addf %24, %26 : vector<8x1xf32>
    %c0_22 = arith.constant 0 : index
    %c0_23 = arith.constant 0 : index
    %28 = vector.load %arg9[%c0_22, %c0_23] : memref<8x1xf32, #tpu.memory_space<vmem>>, vector<8x1xf32>
    tpu.vector_store %arg9[%c0_22, %c0_23], %27 {strides = array<i32>} : memref<8x1xf32, #tpu.memory_space<vmem>>, vector<8x1xf32>,
    return
  }
}

</mosaic_0001>

<llo_original>
// kernel: _critic_forward.1
$region0: #{_critic_forward.1}
  #allocation0 [shape = 'u32[]', space=smem, size = 0x4, offset = 0x4, fixed_abs, tag = 'smem constant byte address 0x4 - core index']
  #allocation1 [shape = 'u32[72,128]{1,0:T(1,128)}', space=vmem, size = 0x9000, scoped, tag = 'internal scratch']
  #allocation2 [shape = 'f32[1,1]{1,0:T(1,128)S(1)}', space=vmem, size = 0x200, scoped, tag = 'scoped memory for _critic_forward.1']
  %s0 = inlined_call_operand.hbm [shape: f32[8,33], index: 0, kind: input, shape index: {}]
  %s1 = inlined_call_operand.vmem [shape: f32[8,4], index: 1, kind: input, shape index: {}]
  %s2 = inlined_call_operand.hbm [shape: f32[33,400], index: 2, kind: input, shape index: {}]
  %s3 = inlined_call_operand.vmem [shape: f32[4,400], index: 3, kind: input, shape index: {}]
  %s4 = inlined_call_operand.hbm [shape: f32[1,400], index: 4, kind: input, shape index: {}]
  %s5 = inlined_call_operand.hbm [shape: bf16[400,384], index: 5, kind: input, shape index: {}]
  %s6 = inlined_call_operand.vmem [shape: f32[1,384], index: 6, kind: input, shape index: {}]
  %s7 = inlined_call_operand.hbm [shape: f32[1,384], index: 7, kind: input, shape index: {}]
  %s8 = inlined_call_operand.<no memory space> [shape: f32[1,1], index: 8, kind: input, shape index: {}]
  %s9 = inlined_call_operand.vmem [shape: f32[8,1], index: 9, kind: output, shape index: {}]
  %s10 = sld [smem:[#allocation0]]
  $region66: #{_critic_forward.1} parent=0
    _
  %s12 = ssub.s32 1, %s10
  %s13 = scalar_select 0, %s12, %s10
  %v14 = vstv %s8
  %15 = vst [vmem:[#allocation2] sm:$0x1] %v14
  $region1: #{_critic_forward.1} parent=0
    #allocation3 [shape = 'u8[4096]{0}', space=vmem, size = 0x1000, scoped, tag = 'input window, operand 0, single buffered']
    #allocation4 [shape = 's32[1]{0}', space=sflag, size = 0x4, scoped, tag = 'scoped memory for _critic_forward.1']
    #allocation5 [shape = 'u8[81920]{0}', space=vmem, size = 0x14000, scoped, tag = 'input window, operand 2, single buffered']
    #allocation6 [shape = 's32[1]{0}', space=sflag, size = 0x4, scoped, tag = 'scoped memory for _critic_forward.1']
    #allocation7 [shape = 'u8[2048]{0}', space=vmem, size = 0x800, scoped, tag = 'input window, operand 4, single buffered']
    #allocation8 [shape = 'u8[307200]{0}', space=vmem, size = 0x4b000, scoped, tag = 'input window, operand 5, single buffered']
    #allocation9 [shape = 's32[1]{0}', space=sflag, size = 0x4, scoped, tag = 'scoped memory for _critic_forward.1']
    #allocation10 [shape = 'u8[1536]{0}', space=vmem, size = 0x800, scoped, tag = 'input window, operand 7, single buffered']
    %16 = vsyncpa [#allocation4], 0
    %17 = vsyncpa [#allocation6], 0
    %18 = vsyncpa [#allocation9], 0
    // Predicated region
    $region2: #{_critic_forward.1} parent=1 // pred_check
      _
    $region3: #{_critic_forward.1} parent=1 // pred_check_branch
      %20 = sbr.rel (0) target = $region5
    $region4: #{_critic_forward.1} parent=1 // pred_region
      %22 = vsyncadd [#allocation4], 0
      %s24 = sshll.u32 %s0, 4
      %s25 = int_to_ptr.hbm [resolvable:$true] %s24
      %s26 = sshll.u32 [#allocation3], 4
      %s27 = int_to_ptr.vmem [resolvable:$true] %s26
      %29 = dma.hbm_to_vmem [thread:$0]  %s25, 128, %s27, [#allocation4]
    $region5: #{_critic_forward.1} parent=1 // pred_fallthru
      _
    // Predicated region
    $region6: #{_critic_forward.1} parent=1 // pred_check
      _
    $region7: #{_critic_forward.1} parent=1 // pred_check_branch
      %31 = sbr.rel (0) target = $region9
    $region8: #{_critic_forward.1} parent=1 // pred_region
      _
    $region9: #{_critic_forward.1} parent=1 // pred_fallthru
      _
    // Predicated region
    $region10: #{_critic_forward.1} parent=1 // pred_check
      _
    $region11: #{_critic_forward.1} parent=1 // pred_check_branch
      %33 = sbr.rel (0) target = $region13
    $region12: #{_critic_forward.1} parent=1 // pred_region
      %35 = vsyncadd [#allocation6], 0
      %s36 = sshll.u32 %s2, 4
      %s37 = int_to_ptr.hbm [resolvable:$true] %s36
      %s38 = sshll.u32 [#allocation5], 4
      %s39 = int_to_ptr.vmem [resolvable:$true] %s38
      %44 = dma.hbm_to_vmem [thread:$0]  %s37, 2560, %s39, [#allocation6], 512, 512, 32
    $region13: #{_critic_forward.1} parent=1 // pred_fallthru
      _
    // Predicated region
    $region14: #{_critic_forward.1} parent=1 // pred_check
      _
    $region15: #{_critic_forward.1} parent=1 // pred_check_branch
      %46 = sbr.rel (0) target = $region17
    $region16: #{_critic_forward.1} parent=1 // pred_region
      _
    $region17: #{_critic_forward.1} parent=1 // pred_fallthru
      _
    // Predicated region
    $region18: #{_critic_forward.1} parent=1 // pred_check
      _
    $region19: #{_critic_forward.1} parent=1 // pred_check_branch
      %48 = sbr.rel (0) target = $region21
    $region20: #{_critic_forward.1} parent=1 // pred_region
      %50 = vsyncadd [#allocation6], 0
      %s52 = sshll.u32 %s4, 4
      %s53 = int_to_ptr.hbm [resolvable:$true] %s52
      %s54 = sshll.u32 [#allocation7], 4
      %s55 = int_to_ptr.vmem [resolvable:$true] %s54
      %57 = dma.hbm_to_vmem [thread:$0]  %s53, 64, %s55, [#allocation6]
    $region21: #{_critic_forward.1} parent=1 // pred_fallthru
      _
    // Predicated region
    $region22: #{_critic_forward.1} parent=1 // pred_check
      _
    $region23: #{_critic_forward.1} parent=1 // pred_check_branch
      %59 = sbr.rel (0) target = $region25
    $region24: #{_critic_forward.1} parent=1 // pred_region
      %61 = vsyncadd [#allocation9], 0
      %s62 = sshll.u32 %s5, 4
      %s63 = int_to_ptr.hbm [resolvable:$true] %s62
      %s64 = sshll.u32 [#allocation8], 4
      %s65 = int_to_ptr.vmem [resolvable:$true] %s64
      %70 = dma.hbm_to_vmem [thread:$0]  %s63, 9600, %s65, [#allocation9], 192, 192, 12
    $region25: #{_critic_forward.1} parent=1 // pred_fallthru
      _
    // Predicated region
    $region26: #{_critic_forward.1} parent=1 // pred_check
      _
    $region27: #{_critic_forward.1} parent=1 // pred_check_branch
      %72 = sbr.rel (0) target = $region29
    $region28: #{_critic_forward.1} parent=1 // pred_region
      _
    $region29: #{_critic_forward.1} parent=1 // pred_fallthru
      _
    // Predicated region
    $region30: #{_critic_forward.1} parent=1 // pred_check
      _
    $region31: #{_critic_forward.1} parent=1 // pred_check_branch
      %74 = sbr.rel (0) target = $region33
    $region32: #{_critic_forward.1} parent=1 // pred_region
      %76 = vsyncadd [#allocation9], 0
      %s78 = sshll.u32 %s7, 4
      %s79 = int_to_ptr.hbm [resolvable:$true] %s78
      %s80 = sshll.u32 [#allocation10], 4
      %s81 = int_to_ptr.vmem [resolvable:$true] %s80
      %83 = dma.hbm_to_vmem [thread:$0]  %s79, 48, %s81, [#allocation9]
    $region33: #{_critic_forward.1} parent=1 // pred_fallthru
      _
    // Predicated region
    $region34: #{_critic_forward.1} parent=1 // pred_check
      _
    $region35: #{_critic_forward.1} parent=1 // pred_check_branch
      %85 = sbr.rel (0) target = $region37
    $region36: #{_critic_forward.1} parent=1 // pred_region
      _
    $region37: #{_critic_forward.1} parent=1 // pred_fallthru
      _
    // Predicated region
    $region38: #{_critic_forward.1} parent=1 // pred_check
      _
    $region39: #{_critic_forward.1} parent=1 // pred_check_branch
      %87 = sbr.rel (0) target = $region41
    $region40: #{_critic_forward.1} parent=1 // pred_region
      %89 = dma.done [#allocation4], 128
    $region41: #{_critic_forward.1} parent=1 // pred_fallthru
      _
    // Predicated region
    $region42: #{_critic_forward.1} parent=1 // pred_check
      _
    $region43: #{_critic_forward.1} parent=1 // pred_check_branch
      %91 = sbr.rel (0) target = $region45
    $region44: #{_critic_forward.1} parent=1 // pred_region
      %93 = dma.done [#allocation6], 2560
    $region45: #{_critic_forward.1} parent=1 // pred_fallthru
      _
    // Predicated region
    $region46: #{_critic_forward.1} parent=1 // pred_check
      _
    $region47: #{_critic_forward.1} parent=1 // pred_check_branch
      %95 = sbr.rel (0) target = $region49
    $region48: #{_critic_forward.1} parent=1 // pred_region
      %97 = dma.done [#allocation6], 64
    $region49: #{_critic_forward.1} parent=1 // pred_fallthru
      _
    // Predicated region
    $region50: #{_critic_forward.1} parent=1 // pred_check
      _
    $region51: #{_critic_forward.1} parent=1 // pred_check_branch
      %99 = sbr.rel (0) target = $region53
    $region52: #{_critic_forward.1} parent=1 // pred_region
      %101 = dma.done [#allocation9], 9600
    $region53: #{_critic_forward.1} parent=1 // pred_fallthru
      _
    // Predicated region
    $region54: #{_critic_forward.1} parent=1 // pred_check
      _
    $region55: #{_critic_forward.1} parent=1 // pred_check_branch
      %103 = sbr.rel (0) target = $region57
    $region56: #{_critic_forward.1} parent=1 // pred_region
      %105 = dma.done [#allocation9], 48
    $region57: #{_critic_forward.1} parent=1 // pred_fallthru
      _
    %v107 = vld [vmem:[#allocation3] sm:$0xff]
    %v108 = vld [vmem:[#allocation5] sm:$0xff]
    %v109 = vld [vmem:[#allocation5 + $0x8] sm:$0xff]
    %v110 = vld [vmem:[#allocation5 + $0x10] sm:$0xff]
    %v111 = vld [vmem:[#allocation5 + $0x18] sm:$0xff]
    %v112 = vld [vmem:[#allocation5 + $0x20] sm:$0xff]
    %v113 = vld [vmem:[#allocation5 + $0x28] sm:$0xff]
    %v114 = vld [vmem:[#allocation5 + $0x30] sm:$0xff]
    %v115 = vld [vmem:[#allocation5 + $0x38] sm:$0xff]
    %v116 = vld [vmem:[#allocation5 + $0x40] sm:$0xff]
    %v117 = vld [vmem:[#allocation5 + $0x48] sm:$0xff]
    %v118 = vld [vmem:[#allocation5 + $0x50] sm:$0xff]
    %v119 = vld [vmem:[#allocation5 + $0x58] sm:$0xff]
    %v120 = vld [vmem:[#allocation5 + $0x60] sm:$0xff]
    %v121 = vld [vmem:[#allocation5 + $0x68] sm:$0xff]
    %v122 = vld [vmem:[#allocation5 + $0x70] sm:$0xff]
    %v123 = vld [vmem:[#allocation5 + $0x78] sm:$0xff]
    %v124 = vld [vmem:[#allocation5 + $0x80] sm:$0x1]
    %v125 = vld [vmem:[#allocation5 + $0x88] sm:$0x1]
    %v126 = vld [vmem:[#allocation5 + $0x90] sm:$0x1]
    %v127 = vld [vmem:[#allocation5 + $0x98] sm:$0x1]
    %v128 = vld [vmem:[%s1] sm:$0xff]
    %v129 = vld [vmem:[%s3] sm:$0xff]
    %v130 = vld [vmem:[%s3 + $0x8] sm:$0xff]
    %133 = vst [vmem:[#allocation1] ss:$2 sm:$0xff] %v129
    %s134 = scalar_lea.vmem [#allocation1], 16
    %135 = vst [vmem:[%s134] ss:$2 sm:$0xff] %v130
    %v136 = vld.sshfl [vmem:[#allocation1] sm:$0xff pattern:$0x75316420]
    %v137 = vld.sshfl [vmem:[#allocation1 + $0x8] sm:$0xff pattern:$0x75316420]
    %v138 = vld.sshfl [vmem:[#allocation1 + $0x10] sm:$0xff pattern:$0x75316420]
    %v139 = vld.sshfl [vmem:[#allocation1 + $0x18] sm:$0xff pattern:$0x75316420]
    %vm140 = vcmask 31744
    %v142 = vsel %vm140, %v128, 0
    %vm144 = vcmask 1043456
    %v145 = vsel %vm144, %v136, 0
    %v147 = vsel %vm144, %v137, 0
    %v149 = vsel %vm144, %v138, 0
    %v151 = vsel %vm144, %v139, 0
    %153 = vmatpush.msra.mxu0 0.0
    %154 = vmatpush.msra.mxu0 0.0
    %155 = vmatpush.msra.mxu0 0.0
    %156 = vmatpush.msra.mxu0 0.0
    %157 = vmatpush.msra.mxu0 0.0
    %158 = vmatpush.msra.mxu0 0.0
    %159 = vmatpush.msra.mxu0 0.0
    %160 = vmatpush.msra.mxu0 0.0
    %161 = vmatpush.msra.mxu0 0.0
    %162 = vmatpush.msra.mxu0 0.0
    %163 = vmatpush.msra.mxu0 0.0
    %164 = vmatpush.msra.mxu0 0.0
    %165 = vmatpush.msra.mxu0 0.0
    %166 = vmatpush.msra.mxu0 0.0
    %167 = vmatpush.msra.mxu0 0.0
    %168 = vmatpush.msra.mxu0 %v145
    %169 = vmatmul.f32.gmra.mxu0 %v142
    %v170 = vpop.f32.mrf.mxu0
    %v171 = vadd.f32 0.0, %v170
    %172 = vdwg.mxu0
    %173 = vmatpush.msra.mxu0 0.0
    %174 = vmatpush.msra.mxu0 0.0
    %175 = vmatpush.msra.mxu0 0.0
    %176 = vmatpush.msra.mxu0 0.0
    %177 = vmatpush.msra.mxu0 0.0
    %178 = vmatpush.msra.mxu0 0.0
    %179 = vmatpush.msra.mxu0 0.0
    %180 = vmatpush.msra.mxu0 0.0
    %181 = vmatpush.msra.mxu0 0.0
    %182 = vmatpush.msra.mxu0 0.0
    %183 = vmatpush.msra.mxu0 0.0
    %184 = vmatpush.msra.mxu0 0.0
    %185 = vmatpush.msra.mxu0 0.0
    %186 = vmatpush.msra.mxu0 0.0
    %187 = vmatpush.msra.mxu0 0.0
    %188 = vmatpush.msra.mxu0 %v147
    %189 = vmatmul.f32.gmra.mxu0 %v142
    %v190 = vpop.f32.mrf.mxu0
    %v191 = vadd.f32 0.0, %v190
    %192 = vdwg.mxu0
    %193 = vmatpush.msra.mxu0 0.0
    %194 = vmatpush.msra.mxu0 0.0
    %195 = vmatpush.msra.mxu0 0.0
    %196 = vmatpush.msra.mxu0 0.0
    %197 = vmatpush.msra.mxu0 0.0
    %198 = vmatpush.msra.mxu0 0.0
    %199 = vmatpush.msra.mxu0 0.0
    %200 = vmatpush.msra.mxu0 0.0
    %201 = vmatpush.msra.mxu0 0.0
    %202 = vmatpush.msra.mxu0 0.0
    %203 = vmatpush.msra.mxu0 0.0
    %204 = vmatpush.msra.mxu0 0.0
    %205 = vmatpush.msra.mxu0 0.0
    %206 = vmatpush.msra.mxu0 0.0
    %207 = vmatpush.msra.mxu0 0.0
    %208 = vmatpush.msra.mxu0 %v149
    %209 = vmatmul.f32.gmra.mxu0 %v142
    %v210 = vpop.f32.mrf.mxu0
    %v211 = vadd.f32 0.0, %v210
    %212 = vdwg.mxu0
    %213 = vmatpush.msra.mxu0 0.0
    %214 = vmatpush.msra.mxu0 0.0
    %215 = vmatpush.msra.mxu0 0.0
    %216 = vmatpush.msra.mxu0 0.0
    %217 = vmatpush.msra.mxu0 0.0
    %218 = vmatpush.msra.mxu0 0.0
    %219 = vmatpush.msra.mxu0 0.0
    %220 = vmatpush.msra.mxu0 0.0
    %221 = vmatpush.msra.mxu0 0.0
    %222 = vmatpush.msra.mxu0 0.0
    %223 = vmatpush.msra.mxu0 0.0
    %224 = vmatpush.msra.mxu0 0.0
    %225 = vmatpush.msra.mxu0 0.0
    %226 = vmatpush.msra.mxu0 0.0
    %227 = vmatpush.msra.mxu0 0.0
    %228 = vmatpush.msra.mxu0 %v151
    %229 = vmatmul.f32.gmra.mxu0 %v142
    %v230 = vpop.f32.mrf.mxu0
    %v231 = vadd.f32 0.0, %v230
    %232 = vdwg.mxu0
    %vm233 = vcmask 269312
    %v235 = vsel %vm233, %v107, 0
    %vm237 = vcmask 1040384
    %v239 = vsel %vm237, %v124, 0
    %v242 = vsel %vm237, %v125, 0
    %v245 = vsel %vm237, %v126, 0
    %v248 = vsel %vm237, %v127, 0
    %250 = vmatpush.msra.mxu0 0.0
    %251 = vmatpush.msra.mxu0 0.0
    %252 = vmatpush.msra.mxu0 0.0
    %253 = vmatpush.msra.mxu0 0.0
    %254 = vmatpush.msra.mxu0 0.0
    %255 = vmatpush.msra.mxu0 0.0
    %256 = vmatpush.msra.mxu0 0.0
    %257 = vmatpush.msra.mxu0 0.0
    %258 = vmatpush.msra.mxu0 0.0
    %259 = vmatpush.msra.mxu0 0.0
    %260 = vmatpush.msra.mxu0 0.0
    %261 = vmatpush.msra.mxu0 %v239
    %262 = vmatpush.msra.mxu0 %v120
    %263 = vmatpush.msra.mxu0 %v116
    %264 = vmatpush.msra.mxu0 %v112
    %265 = vmatpush.msra.mxu0 %v108
    %266 = vmatmul.f32.gmra.mxu0 %v235
    %v267 = vpop.f32.mrf.mxu0
    %v268 = vadd.f32 %v171, %v267
    %269 = vdwg.mxu0
    %270 = vmatpush.msra.mxu0 0.0
    %271 = vmatpush.msra.mxu0 0.0
    %272 = vmatpush.msra.mxu0 0.0
    %273 = vmatpush.msra.mxu0 0.0
    %274 = vmatpush.msra.mxu0 0.0
    %275 = vmatpush.msra.mxu0 0.0
    %276 = vmatpush.msra.mxu0 0.0
    %277 = vmatpush.msra.mxu0 0.0
    %278 = vmatpush.msra.mxu0 0.0
    %279 = vmatpush.msra.mxu0 0.0
    %280 = vmatpush.msra.mxu0 0.0
    %281 = vmatpush.msra.mxu0 %v242
    %282 = vmatpush.msra.mxu0 %v121
    %283 = vmatpush.msra.mxu0 %v117
    %284 = vmatpush.msra.mxu0 %v113
    %285 = vmatpush.msra.mxu0 %v109
    %286 = vmatmul.f32.gmra.mxu0 %v235
    %v287 = vpop.f32.mrf.mxu0
    %v288 = vadd.f32 %v191, %v287
    %289 = vdwg.mxu0
    %290 = vmatpush.msra.mxu0 0.0
    %291 = vmatpush.msra.mxu0 0.0
    %292 = vmatpush.msra.mxu0 0.0
    %293 = vmatpush.msra.mxu0 0.0
    %294 = vmatpush.msra.mxu0 0.0
    %295 = vmatpush.msra.mxu0 0.0
    %296 = vmatpush.msra.mxu0 0.0
    %297 = vmatpush.msra.mxu0 0.0
    %298 = vmatpush.msra.mxu0 0.0
    %299 = vmatpush.msra.mxu0 0.0
    %300 = vmatpush.msra.mxu0 0.0
    %301 = vmatpush.msra.mxu0 %v245
    %302 = vmatpush.msra.mxu0 %v122
    %303 = vmatpush.msra.mxu0 %v118
    %304 = vmatpush.msra.mxu0 %v114
    %305 = vmatpush.msra.mxu0 %v110
    %306 = vmatmul.f32.gmra.mxu0 %v235
    %v307 = vpop.f32.mrf.mxu0
    %v308 = vadd.f32 %v211, %v307
    %309 = vdwg.mxu0
    %310 = vmatpush.msra.mxu0 0.0
    %311 = vmatpush.msra.mxu0 0.0
    %312 = vmatpush.msra.mxu0 0.0
    %313 = vmatpush.msra.mxu0 0.0
    %314 = vmatpush.msra.mxu0 0.0
    %315 = vmatpush.msra.mxu0 0.0
    %316 = vmatpush.msra.mxu0 0.0
    %317 = vmatpush.msra.mxu0 0.0
    %318 = vmatpush.msra.mxu0 0.0
    %319 = vmatpush.msra.mxu0 0.0
    %320 = vmatpush.msra.mxu0 0.0
    %321 = vmatpush.msra.mxu0 %v248
    %322 = vmatpush.msra.mxu0 %v123
    %323 = vmatpush.msra.mxu0 %v119
    %324 = vmatpush.msra.mxu0 %v115
    %325 = vmatpush.msra.mxu0 %v111
    %326 = vmatmul.f32.gmra.mxu0 %v235
    %v327 = vpop.f32.mrf.mxu0
    %v328 = vadd.f32 %v231, %v327
    %329 = vdwg.mxu0
    %v330 = vld [vmem:[#allocation7] sm:$0xf]
    %v332 = vperm.slane %v330, 0
    %v333 = vperm.slane %v330, 1
    %v334 = vperm.slane %v330, 2
    %v335 = vperm.slane %v330, 3
    %v340 = vadd.f32 %v268, %v332
    %v341 = vadd.f32 %v288, %v333
    %v342 = vadd.f32 %v308, %v334
    %v343 = vadd.f32 %v328, %v335
    %v344 = vmax.f32 %v340, 0.0
    %v345 = vmax.f32 %v341, 0.0
    %v346 = vmax.f32 %v342, 0.0
    %v347 = vmax.f32 %v343, 0.0
    %v348 = vpack.c.bf16 %v344, %v344
    %v349 = vpack.c.bf16 %v345, %v345
    %v350 = vpack.c.bf16 %v346, %v346
    %v351 = vpack.c.bf16 %v347, %v347
    %v352 = vld [vmem:[#allocation8] sm:$0xff]
    %v353 = vld [vmem:[#allocation8 + $0x8] sm:$0xf]
    %v354 = vld [vmem:[#allocation8 + $0xc] sm:$0xff]
    %v355 = vld [vmem:[#allocation8 + $0x14] sm:$0xf]
    %v356 = vld [vmem:[#allocation8 + $0x18] sm:$0xff]
    %v357 = vld [vmem:[#allocation8 + $0x20] sm:$0xf]
    %v358 = vld [vmem:[#allocation8 + $0x24] sm:$0xff]
    %v359 = vld [vmem:[#allocation8 + $0x2c] sm:$0xf]
    %v360 = vld [vmem:[#allocation8 + $0x30] sm:$0xff]
    %v361 = vld [vmem:[#allocation8 + $0x38] sm:$0xf]
    %v362 = vld [vmem:[#allocation8 + $0x3c] sm:$0xff]
    %v363 = vld [vmem:[#allocation8 + $0x44] sm:$0xf]
    %v364 = vld [vmem:[#allocation8 + $0x48] sm:$0xff]
    %v365 = vld [vmem:[#allocation8 + $0x50] sm:$0xf]
    %v366 = vld [vmem:[#allocation8 + $0x54] sm:$0xff]
    %v367 = vld [vmem:[#allocation8 + $0x5c] sm:$0xf]
    %v368 = vld [vmem:[#allocation8 + $0x60] sm:$0xff]
    %v369 = vld [vmem:[#allocation8 + $0x68] sm:$0xf]
    %v370 = vld [vmem:[#allocation8 + $0x6c] sm:$0xff]
    %v371 = vld [vmem:[#allocation8 + $0x74] sm:$0xf]
    %v372 = vld [vmem:[#allocation8 + $0x78] sm:$0xff]
    %v373 = vld [vmem:[#allocation8 + $0x80] sm:$0xf]
    %v374 = vld [vmem:[#allocation8 + $0x84] sm:$0xff]
    %v375 = vld [vmem:[#allocation8 + $0x8c] sm:$0xf]
    %v376 = vld [vmem:[#allocation8 + $0x90] sm:$0xff]
    %v377 = vld [vmem:[#allocation8 + $0x98] sm:$0xf]
    %v378 = vld [vmem:[#allocation8 + $0x9c] sm:$0xff]
    %v379 = vld [vmem:[#allocation8 + $0xa4] sm:$0xf]
    %v380 = vld [vmem:[#allocation8 + $0xa8] sm:$0xff]
    %v381 = vld [vmem:[#allocation8 + $0xb0] sm:$0xf]
    %v382 = vld [vmem:[#allocation8 + $0xb4] sm:$0xff]
    %v383 = vld [vmem:[#allocation8 + $0xbc] sm:$0xf]
    %v384 = vld [vmem:[#allocation8 + $0xc0] sm:$0xff]
    %v385 = vld [vmem:[#allocation8 + $0xc8] sm:$0xf]
    %v386 = vld [vmem:[#allocation8 + $0xcc] sm:$0xff]
    %v387 = vld [vmem:[#allocation8 + $0xd4] sm:$0xf]
    %v388 = vld [vmem:[#allocation8 + $0xd8] sm:$0xff]
    %v389 = vld [vmem:[#allocation8 + $0xe0] sm:$0xf]
    %v390 = vld [vmem:[#allocation8 + $0xe4] sm:$0xff]
    %v391 = vld [vmem:[#allocation8 + $0xec] sm:$0xf]
    %v392 = vld [vmem:[#allocation8 + $0xf0] sm:$0xff]
    %v393 = vld [vmem:[#allocation8 + $0xf8] sm:$0xf]
    %v394 = vld [vmem:[#allocation8 + $0xfc] sm:$0xff]
    %v395 = vld [vmem:[#allocation8 + $0x104] sm:$0xf]
    %v396 = vld [vmem:[#allocation8 + $0x108] sm:$0xff]
    %v397 = vld [vmem:[#allocation8 + $0x110] sm:$0xf]
    %v398 = vld [vmem:[#allocation8 + $0x114] sm:$0xff]
    %v399 = vld [vmem:[#allocation8 + $0x11c] sm:$0xf]
    %v400 = vld [vmem:[#allocation8 + $0x120] sm:$0xff]
    %v401 = vld [vmem:[#allocation8 + $0x128] sm:$0xf]
    %v402 = vld [vmem:[#allocation8 + $0x12c] sm:$0xff]
    %v403 = vld [vmem:[#allocation8 + $0x134] sm:$0xf]
    %v404 = vld [vmem:[#allocation8 + $0x138] sm:$0xff]
    %v405 = vld [vmem:[#allocation8 + $0x140] sm:$0xf]
    %v406 = vld [vmem:[#allocation8 + $0x144] sm:$0xff]
    %v407 = vld [vmem:[#allocation8 + $0x14c] sm:$0xf]
    %v408 = vld [vmem:[#allocation8 + $0x150] sm:$0xff]
    %v409 = vld [vmem:[#allocation8 + $0x158] sm:$0xf]
    %v410 = vld [vmem:[#allocation8 + $0x15c] sm:$0xff]
    %v411 = vld [vmem:[#allocation8 + $0x164] sm:$0xf]
    %v412 = vld [vmem:[#allocation8 + $0x168] sm:$0xff]
    %v413 = vld [vmem:[#allocation8 + $0x170] sm:$0xf]
    %v414 = vld [vmem:[#allocation8 + $0x174] sm:$0xff]
    %v415 = vld [vmem:[#allocation8 + $0x17c] sm:$0xf]
    %v416 = vld [vmem:[#allocation8 + $0x180] sm:$0xff]
    %v417 = vld [vmem:[#allocation8 + $0x188] sm:$0xf]
    %v418 = vld [vmem:[#allocation8 + $0x18c] sm:$0xff]
    %v419 = vld [vmem:[#allocation8 + $0x194] sm:$0xf]
    %v420 = vld [vmem:[#allocation8 + $0x198] sm:$0xff]
    %v421 = vld [vmem:[#allocation8 + $0x1a0] sm:$0xf]
    %v422 = vld [vmem:[#allocation8 + $0x1a4] sm:$0xff]
    %v423 = vld [vmem:[#allocation8 + $0x1ac] sm:$0xf]
    %v424 = vld [vmem:[#allocation8 + $0x1b0] sm:$0xff]
    %v425 = vld [vmem:[#allocation8 + $0x1b8] sm:$0xf]
    %v426 = vld [vmem:[#allocation8 + $0x1bc] sm:$0xff]
    %v427 = vld [vmem:[#allocation8 + $0x1c4] sm:$0xf]
    %v428 = vld [vmem:[#allocation8 + $0x1c8] sm:$0xff]
    %v429 = vld [vmem:[#allocation8 + $0x1d0] sm:$0xf]
    %v430 = vld [vmem:[#allocation8 + $0x1d4] sm:$0xff]
    %v431 = vld [vmem:[#allocation8 + $0x1dc] sm:$0xf]
    %v432 = vld [vmem:[#allocation8 + $0x1e0] sm:$0xff]
    %v433 = vld [vmem:[#allocation8 + $0x1e8] sm:$0xf]
    %v434 = vld [vmem:[#allocation8 + $0x1ec] sm:$0xff]
    %v435 = vld [vmem:[#allocation8 + $0x1f4] sm:$0xf]
    %v436 = vld [vmem:[#allocation8 + $0x1f8] sm:$0xff]
    %v437 = vld [vmem:[#allocation8 + $0x200] sm:$0xf]
    %v438 = vld [vmem:[#allocation8 + $0x204] sm:$0xff]
    %v439 = vld [vmem:[#allocation8 + $0x20c] sm:$0xf]
    %v440 = vld [vmem:[#allocation8 + $0x210] sm:$0xff]
    %v441 = vld [vmem:[#allocation8 + $0x218] sm:$0xf]
    %v442 = vld [vmem:[#allocation8 + $0x21c] sm:$0xff]
    %v443 = vld [vmem:[#allocation8 + $0x224] sm:$0xf]
    %v444 = vld [vmem:[#allocation8 + $0x228] sm:$0xff]
    %v445 = vld [vmem:[#allocation8 + $0x230] sm:$0xf]
    %v446 = vld [vmem:[#allocation8 + $0x234] sm:$0xff]
    %v447 = vld [vmem:[#allocation8 + $0x23c] sm:$0xf]
    %v448 = vld [vmem:[#allocation8 + $0x240] sm:$0xff]
    %v449 = vld [vmem:[#allocation8 + $0x248] sm:$0xf]
    %v450 = vld [vmem:[#allocation8 + $0x24c] sm:$0xff]
    %v451 = vld [vmem:[#allocation8 + $0x254] sm:$0xf]
    %v452 = vld [vmem:[%s6] sm:$0x7]
    %v454 = vperm.slane %v452, 0
    %v455 = vperm.slane %v452, 1
    %v456 = vperm.slane %v452, 2
    %v560 = vunpack.c.l.b16 %v352
    %v561 = vunpack.c.h.b16 %v352
    %v562 = vunpack.c.l.b16 %v353
    %v563 = vunpack.c.l.b16 %v354
    %v564 = vunpack.c.h.b16 %v354
    %v565 = vunpack.c.l.b16 %v355
    %v566 = vunpack.c.l.b16 %v356
    %v567 = vunpack.c.h.b16 %v356
    %v568 = vunpack.c.l.b16 %v357
    %v569 = vunpack.c.l.b16 %v358
    %v570 = vunpack.c.h.b16 %v358
    %v571 = vunpack.c.l.b16 %v359
    %v572 = vunpack.c.l.b16 %v360
    %v573 = vunpack.c.h.b16 %v360
    %v574 = vunpack.c.l.b16 %v361
    %v575 = vunpack.c.l.b16 %v362
    %v576 = vunpack.c.h.b16 %v362
    %v577 = vunpack.c.l.b16 %v363
    %v578 = vunpack.c.l.b16 %v364
    %v579 = vunpack.c.h.b16 %v364
    %v580 = vunpack.c.l.b16 %v365
    %v581 = vunpack.c.l.b16 %v366
    %v582 = vunpack.c.h.b16 %v366
    %v583 = vunpack.c.l.b16 %v367
    %v584 = vunpack.c.l.b16 %v368
    %v585 = vunpack.c.h.b16 %v368
    %v586 = vunpack.c.l.b16 %v369
    %v587 = vunpack.c.l.b16 %v370
    %v588 = vunpack.c.h.b16 %v370
    %v589 = vunpack.c.l.b16 %v371
    %v590 = vunpack.c.l.b16 %v372
    %v591 = vunpack.c.h.b16 %v372
    %v592 = vunpack.c.l.b16 %v373
    %v593 = vunpack.c.l.b16 %v374
    %v594 = vunpack.c.h.b16 %v374
    %v595 = vunpack.c.l.b16 %v375
    %v596 = vunpack.c.l.b16 %v376
    %v597 = vunpack.c.h.b16 %v376
    %v598 = vunpack.c.l.b16 %v377
    %v599 = vunpack.c.l.b16 %v378
    %v600 = vunpack.c.h.b16 %v378
    %v601 = vunpack.c.l.b16 %v379
    %v602 = vunpack.c.l.b16 %v380
    %v603 = vunpack.c.h.b16 %v380
    %v604 = vunpack.c.l.b16 %v381
    %v605 = vunpack.c.l.b16 %v382
    %v606 = vunpack.c.h.b16 %v382
    %v607 = vunpack.c.l.b16 %v383
    %v608 = vunpack.c.l.b16 %v384
    %v609 = vunpack.c.h.b16 %v384
    %v610 = vunpack.c.l.b16 %v385
    %v611 = vunpack.c.l.b16 %v386
    %v612 = vunpack.c.h.b16 %v386
    %v613 = vunpack.c.l.b16 %v387
    %v614 = vunpack.c.l.b16 %v388
    %v615 = vunpack.c.h.b16 %v388
    %v616 = vunpack.c.l.b16 %v389
    %v617 = vunpack.c.l.b16 %v390
    %v618 = vunpack.c.h.b16 %v390
    %v619 = vunpack.c.l.b16 %v391
    %v620 = vunpack.c.l.b16 %v392
    %v621 = vunpack.c.h.b16 %v392
    %v622 = vunpack.c.l.b16 %v393
    %v623 = vunpack.c.l.b16 %v394
    %v624 = vunpack.c.h.b16 %v394
    %v625 = vunpack.c.l.b16 %v395
    %v626 = vunpack.c.l.b16 %v396
    %v627 = vunpack.c.h.b16 %v396
    %v628 = vunpack.c.l.b16 %v397
    %v629 = vunpack.c.l.b16 %v398
    %v630 = vunpack.c.h.b16 %v398
    %v631 = vunpack.c.l.b16 %v399
    %v632 = vunpack.c.l.b16 %v400
    %v633 = vunpack.c.h.b16 %v400
    %v634 = vunpack.c.l.b16 %v401
    %v635 = vunpack.c.l.b16 %v402
    %v636 = vunpack.c.h.b16 %v402
    %v637 = vunpack.c.l.b16 %v403
    %v638 = vunpack.c.l.b16 %v404
    %v639 = vunpack.c.h.b16 %v404
    %v640 = vunpack.c.l.b16 %v405
    %v641 = vunpack.c.l.b16 %v406
    %v642 = vunpack.c.h.b16 %v406
    %v643 = vunpack.c.l.b16 %v407
    %v644 = vunpack.c.l.b16 %v408
    %v645 = vunpack.c.h.b16 %v408
    %v646 = vunpack.c.l.b16 %v409
    %v647 = vunpack.c.l.b16 %v410
    %v648 = vunpack.c.h.b16 %v410
    %v649 = vunpack.c.l.b16 %v411
    %v650 = vunpack.c.l.b16 %v412
    %v651 = vunpack.c.h.b16 %v412
    %v652 = vunpack.c.l.b16 %v413
    %v653 = vunpack.c.l.b16 %v414
    %v654 = vunpack.c.h.b16 %v414
    %v655 = vunpack.c.l.b16 %v415
    %v656 = vunpack.c.l.b16 %v416
    %v657 = vunpack.c.h.b16 %v416
    %v658 = vunpack.c.l.b16 %v417
    %v659 = vunpack.c.l.b16 %v418
    %v660 = vunpack.c.h.b16 %v418
    %v661 = vunpack.c.l.b16 %v419
    %v662 = vunpack.c.l.b16 %v420
    %v663 = vunpack.c.h.b16 %v420
    %v664 = vunpack.c.l.b16 %v421
    %v665 = vunpack.c.l.b16 %v422
    %v666 = vunpack.c.h.b16 %v422
    %v667 = vunpack.c.l.b16 %v423
    %v668 = vunpack.c.l.b16 %v424
    %v669 = vunpack.c.h.b16 %v424
    %v670 = vunpack.c.l.b16 %v425
    %v671 = vunpack.c.l.b16 %v426
    %v672 = vunpack.c.h.b16 %v426
    %v673 = vunpack.c.l.b16 %v427
    %v674 = vunpack.c.l.b16 %v428
    %v675 = vunpack.c.h.b16 %v428
    %v676 = vunpack.c.l.b16 %v429
    %v677 = vunpack.c.l.b16 %v430
    %v678 = vunpack.c.h.b16 %v430
    %v679 = vunpack.c.l.b16 %v431
    %v680 = vunpack.c.l.b16 %v432
    %v681 = vunpack.c.h.b16 %v432
    %v682 = vunpack.c.l.b16 %v433
    %v683 = vunpack.c.l.b16 %v434
    %v684 = vunpack.c.h.b16 %v434
    %v685 = vunpack.c.l.b16 %v435
    %v686 = vunpack.c.l.b16 %v436
    %v687 = vunpack.c.h.b16 %v436
    %v688 = vunpack.c.l.b16 %v437
    %v689 = vunpack.c.l.b16 %v438
    %v690 = vunpack.c.h.b16 %v438
    %v691 = vunpack.c.l.b16 %v439
    %v692 = vunpack.c.l.b16 %v440
    %v693 = vunpack.c.h.b16 %v440
    %v694 = vunpack.c.l.b16 %v441
    %v695 = vunpack.c.l.b16 %v442
    %v696 = vunpack.c.h.b16 %v442
    %v697 = vunpack.c.l.b16 %v443
    %v698 = vunpack.c.l.b16 %v444
    %v699 = vunpack.c.h.b16 %v444
    %v700 = vunpack.c.l.b16 %v445
    %v701 = vunpack.c.l.b16 %v446
    %v702 = vunpack.c.h.b16 %v446
    %v703 = vunpack.c.l.b16 %v447
    %v704 = vunpack.c.l.b16 %v448
    %v705 = vunpack.c.h.b16 %v448
    %v706 = vunpack.c.l.b16 %v449
    %v707 = vunpack.c.l.b16 %v450
    %v708 = vunpack.c.h.b16 %v450
    %v709 = vunpack.c.l.b16 %v451
    %v710 = vpack.c.b16 %v563, %v560
    %v711 = vpack.c.b16 %v564, %v561
    %v712 = vpack.c.b16 %v565, %v562
    %v713 = vpack.c.b16 %v569, %v566
    %v714 = vpack.c.b16 %v570, %v567
    %v715 = vpack.c.b16 %v571, %v568
    %v716 = vpack.c.b16 %v575, %v572
    %v717 = vpack.c.b16 %v576, %v573
    %v718 = vpack.c.b16 %v577, %v574
    %v719 = vpack.c.b16 %v581, %v578
    %v720 = vpack.c.b16 %v582, %v579
    %v721 = vpack.c.b16 %v583, %v580
    %v722 = vpack.c.b16 %v587, %v584
    %v723 = vpack.c.b16 %v588, %v585
    %v724 = vpack.c.b16 %v589, %v586
    %v725 = vpack.c.b16 %v593, %v590
    %v726 = vpack.c.b16 %v594, %v591
    %v727 = vpack.c.b16 %v595, %v592
    %v728 = vpack.c.b16 %v599, %v596
    %v729 = vpack.c.b16 %v600, %v597
    %v730 = vpack.c.b16 %v601, %v598
    %v731 = vpack.c.b16 %v605, %v602
    %v732 = vpack.c.b16 %v606, %v603
    %v733 = vpack.c.b16 %v607, %v604
    %v734 = vpack.c.b16 %v611, %v608
    %v735 = vpack.c.b16 %v612, %v609
    %v736 = vpack.c.b16 %v613, %v610
    %v737 = vpack.c.b16 %v617, %v614
    %v738 = vpack.c.b16 %v618, %v615
    %v739 = vpack.c.b16 %v619, %v616
    %v740 = vpack.c.b16 %v623, %v620
    %v741 = vpack.c.b16 %v624, %v621
    %v742 = vpack.c.b16 %v625, %v622
    %v743 = vpack.c.b16 %v629, %v626
    %v744 = vpack.c.b16 %v630, %v627
    %v745 = vpack.c.b16 %v631, %v628
    %v746 = vpack.c.b16 %v635, %v632
    %v747 = vpack.c.b16 %v636, %v633
    %v748 = vpack.c.b16 %v637, %v634
    %v749 = vpack.c.b16 %v641, %v638
    %v750 = vpack.c.b16 %v642, %v639
    %v751 = vpack.c.b16 %v643, %v640
    %v752 = vpack.c.b16 %v647, %v644
    %v753 = vpack.c.b16 %v648, %v645
    %v754 = vpack.c.b16 %v649, %v646
    %v755 = vpack.c.b16 %v653, %v650
    %v756 = vpack.c.b16 %v654, %v651
    %v757 = vpack.c.b16 %v655, %v652
    %v758 = vpack.c.b16 %v659, %v656
    %v759 = vpack.c.b16 %v660, %v657
    %v760 = vpack.c.b16 %v661, %v658
    %v761 = vpack.c.b16 %v665, %v662
    %v762 = vpack.c.b16 %v666, %v663
    %v763 = vpack.c.b16 %v667, %v664
    %v764 = vpack.c.b16 %v671, %v668
    %v765 = vpack.c.b16 %v672, %v669
    %v766 = vpack.c.b16 %v673, %v670
    %v767 = vpack.c.b16 %v677, %v674
    %v768 = vpack.c.b16 %v678, %v675
    %v769 = vpack.c.b16 %v679, %v676
    %v770 = vpack.c.b16 %v683, %v680
    %v771 = vpack.c.b16 %v684, %v681
    %v772 = vpack.c.b16 %v685, %v682
    %v773 = vpack.c.b16 %v689, %v686
    %v774 = vpack.c.b16 %v690, %v687
    %v775 = vpack.c.b16 %v691, %v688
    %v776 = vpack.c.b16 %v695, %v692
    %v777 = vpack.c.b16 %v696, %v693
    %v778 = vpack.c.b16 %v697, %v694
    %v779 = vpack.c.b16 %v701, %v698
    %v780 = vpack.c.b16 %v702, %v699
    %v781 = vpack.c.b16 %v703, %v700
    %v782 = vpack.c.b16 %v707, %v704
    %v783 = vpack.c.b16 %v708, %v705
    %v784 = vpack.c.b16 %v709, %v706
    %vm860 = vcmask 130048
    %v862 = vsel %vm860, %v351, 0
    %864 = vmatpush.bf16.msra.mxu0 %v731
    %865 = vmatpush.bf16.msra.mxu0 %v728
    %866 = vmatpush.bf16.msra.mxu0 %v725
    %867 = vmatpush.bf16.msra.mxu0 %v722
    %868 = vmatpush.bf16.msra.mxu0 %v719
    %869 = vmatpush.bf16.msra.mxu0 %v716
    %870 = vmatpush.bf16.msra.mxu0 %v713
    %871 = vmatpush.bf16.msra.mxu0 %v710
    %872 = vmatmul.bf16.gmra.mxu0 %v348
    %v873 = vpop.f32.mrf.mxu0
    %v874 = vadd.f32 %v454, %v873
    %v875 = vpop.f32.mrf.mxu0
    %876 = vdwg.mxu0
    %877 = vmatpush.bf16.msra.mxu0 %v755
    %878 = vmatpush.bf16.msra.mxu0 %v752
    %879 = vmatpush.bf16.msra.mxu0 %v749
    %880 = vmatpush.bf16.msra.mxu0 %v746
    %881 = vmatpush.bf16.msra.mxu0 %v743
    %882 = vmatpush.bf16.msra.mxu0 %v740
    %883 = vmatpush.bf16.msra.mxu0 %v737
    %884 = vmatpush.bf16.msra.mxu0 %v734
    %885 = vmatmul.bf16.gmra.mxu0 %v349
    %v886 = vpop.f32.mrf.mxu0
    %v887 = vadd.f32 %v874, %v886
    %v888 = vpop.f32.mrf.mxu0
    %889 = vdwg.mxu0
    %890 = vmatpush.bf16.msra.mxu0 %v779
    %891 = vmatpush.bf16.msra.mxu0 %v776
    %892 = vmatpush.bf16.msra.mxu0 %v773
    %893 = vmatpush.bf16.msra.mxu0 %v770
    %894 = vmatpush.bf16.msra.mxu0 %v767
    %895 = vmatpush.bf16.msra.mxu0 %v764
    %896 = vmatpush.bf16.msra.mxu0 %v761
    %897 = vmatpush.bf16.msra.mxu0 %v758
    %898 = vmatmul.bf16.gmra.mxu0 %v350
    %v899 = vpop.f32.mrf.mxu0
    %v900 = vadd.f32 %v887, %v899
    %v901 = vpop.f32.mrf.mxu0
    %902 = vdwg.mxu0
    %903 = vmatpush.bf16.msra.mxu0 0
    %904 = vmatpush.bf16.msra.mxu0 0
    %905 = vmatpush.bf16.msra.mxu0 0
    %906 = vmatpush.bf16.msra.mxu0 0
    %907 = vmatpush.bf16.msra.mxu0 0
    %908 = vmatpush.bf16.msra.mxu0 0
    %909 = vmatpush.bf16.msra.mxu0 0
    %910 = vmatpush.bf16.msra.mxu0 %v782
    %911 = vmatmul.bf16.gmra.mxu0 %v862
    %v912 = vpop.f32.mrf.mxu0
    %v913 = vadd.f32 %v900, %v912
    %v914 = vpop.f32.mrf.mxu0
    %915 = vdwg.mxu0
    %916 = vmatpush.bf16.msra.mxu0 %v732
    %917 = vmatpush.bf16.msra.mxu0 %v729
    %918 = vmatpush.bf16.msra.mxu0 %v726
    %919 = vmatpush.bf16.msra.mxu0 %v723
    %920 = vmatpush.bf16.msra.mxu0 %v720
    %921 = vmatpush.bf16.msra.mxu0 %v717
    %922 = vmatpush.bf16.msra.mxu0 %v714
    %923 = vmatpush.bf16.msra.mxu0 %v711
    %924 = vmatmul.bf16.gmra.mxu0 %v348
    %v925 = vpop.f32.mrf.mxu0
    %v926 = vadd.f32 %v455, %v925
    %v927 = vpop.f32.mrf.mxu0
    %928 = vdwg.mxu0
    %929 = vmatpush.bf16.msra.mxu0 %v756
    %930 = vmatpush.bf16.msra.mxu0 %v753
    %931 = vmatpush.bf16.msra.mxu0 %v750
    %932 = vmatpush.bf16.msra.mxu0 %v747
    %933 = vmatpush.bf16.msra.mxu0 %v744
    %934 = vmatpush.bf16.msra.mxu0 %v741
    %935 = vmatpush.bf16.msra.mxu0 %v738
    %936 = vmatpush.bf16.msra.mxu0 %v735
    %937 = vmatmul.bf16.gmra.mxu0 %v349
    %v938 = vpop.f32.mrf.mxu0
    %v939 = vadd.f32 %v926, %v938
    %v940 = vpop.f32.mrf.mxu0
    %941 = vdwg.mxu0
    %942 = vmatpush.bf16.msra.mxu0 %v780
    %943 = vmatpush.bf16.msra.mxu0 %v777
    %944 = vmatpush.bf16.msra.mxu0 %v774
    %945 = vmatpush.bf16.msra.mxu0 %v771
    %946 = vmatpush.bf16.msra.mxu0 %v768
    %947 = vmatpush.bf16.msra.mxu0 %v765
    %948 = vmatpush.bf16.msra.mxu0 %v762
    %949 = vmatpush.bf16.msra.mxu0 %v759
    %950 = vmatmul.bf16.gmra.mxu0 %v350
    %v951 = vpop.f32.mrf.mxu0
    %v952 = vadd.f32 %v939, %v951
    %v953 = vpop.f32.mrf.mxu0
    %954 = vdwg.mxu0
    %955 = vmatpush.bf16.msra.mxu0 0
    %956 = vmatpush.bf16.msra.mxu0 0
    %957 = vmatpush.bf16.msra.mxu0 0
    %958 = vmatpush.bf16.msra.mxu0 0
    %959 = vmatpush.bf16.msra.mxu0 0
    %960 = vmatpush.bf16.msra.mxu0 0
    %961 = vmatpush.bf16.msra.mxu0 0
    %962 = vmatpush.bf16.msra.mxu0 %v783
    %963 = vmatmul.bf16.gmra.mxu0 %v862
    %v964 = vpop.f32.mrf.mxu0
    %v965 = vadd.f32 %v952, %v964
    %v966 = vpop.f32.mrf.mxu0
    %967 = vdwg.mxu0
    %968 = vmatpush.bf16.msra.mxu0 %v733
    %969 = vmatpush.bf16.msra.mxu0 %v730
    %970 = vmatpush.bf16.msra.mxu0 %v727
    %971 = vmatpush.bf16.msra.mxu0 %v724
    %972 = vmatpush.bf16.msra.mxu0 %v721
    %973 = vmatpush.bf16.msra.mxu0 %v718
    %974 = vmatpush.bf16.msra.mxu0 %v715
    %975 = vmatpush.bf16.msra.mxu0 %v712
    %976 = vmatmul.bf16.gmra.mxu0 %v348
    %v977 = vpop.f32.mrf.mxu0
    %v978 = vadd.f32 %v456, %v977
    %v979 = vpop.f32.mrf.mxu0
    %980 = vdwg.mxu0
    %981 = vmatpush.bf16.msra.mxu0 %v757
    %982 = vmatpush.bf16.msra.mxu0 %v754
    %983 = vmatpush.bf16.msra.mxu0 %v751
    %984 = vmatpush.bf16.msra.mxu0 %v748
    %985 = vmatpush.bf16.msra.mxu0 %v745
    %986 = vmatpush.bf16.msra.mxu0 %v742
    %987 = vmatpush.bf16.msra.mxu0 %v739
    %988 = vmatpush.bf16.msra.mxu0 %v736
    %989 = vmatmul.bf16.gmra.mxu0 %v349
    %v990 = vpop.f32.mrf.mxu0
    %v991 = vadd.f32 %v978, %v990
    %v992 = vpop.f32.mrf.mxu0
    %993 = vdwg.mxu0
    %994 = vmatpush.bf16.msra.mxu0 %v781
    %995 = vmatpush.bf16.msra.mxu0 %v778
    %996 = vmatpush.bf16.msra.mxu0 %v775
    %997 = vmatpush.bf16.msra.mxu0 %v772
    %998 = vmatpush.bf16.msra.mxu0 %v769
    %999 = vmatpush.bf16.msra.mxu0 %v766
    %1000 = vmatpush.bf16.msra.mxu0 %v763
    %1001 = vmatpush.bf16.msra.mxu0 %v760
    %1002 = vmatmul.bf16.gmra.mxu0 %v350
    %v1003 = vpop.f32.mrf.mxu0
    %v1004 = vadd.f32 %v991, %v1003
    %v1005 = vpop.f32.mrf.mxu0
    %1006 = vdwg.mxu0
    %1007 = vmatpush.bf16.msra.mxu0 0
    %1008 = vmatpush.bf16.msra.mxu0 0
    %1009 = vmatpush.bf16.msra.mxu0 0
    %1010 = vmatpush.bf16.msra.mxu0 0
    %1011 = vmatpush.bf16.msra.mxu0 0
    %1012 = vmatpush.bf16.msra.mxu0 0
    %1013 = vmatpush.bf16.msra.mxu0 0
    %1014 = vmatpush.bf16.msra.mxu0 %v784
    %1015 = vmatmul.bf16.gmra.mxu0 %v862
    %v1016 = vpop.f32.mrf.mxu0
    %v1017 = vadd.f32 %v1004, %v1016
    %v1018 = vpop.f32.mrf.mxu0
    %1019 = vdwg.mxu0
    %v1020 = vmax.f32 %v913, 0.0
    %v1021 = vmax.f32 %v965, 0.0
    %v1022 = vmax.f32 %v1017, 0.0
    %v1023 = vld [vmem:[#allocation10] sm:$0x7]
    %v1025 = vperm.slane %v1023, 0
    %v1026 = vperm.slane %v1023, 1
    %v1027 = vperm.slane %v1023, 2
    %v1031 = vmul.f32 %v1020, %v1025
    %v1032 = vmul.f32 %v1021, %v1026
    %v1033 = vmul.f32 %v1022, %v1027
    %v1034 = vadd.f32 %v1031, %v1032
    %v1035 = vadd.f32 %v1034, %v1033
    %1036 = vadd.xlane.f32.xlu0 %v1035
    %v1037 = vpop.xlane.xlu0 %1036
    %v1038 = vld [vmem:[#allocation2] sm:$0x1]
    %v1040 = vperm.slane %v1038, 0
    %v1042 = vadd.f32 %v1037, %v1040
    %vm1043 = vcmask 7168
    %1044 = vst.msk [vmem:[%s9] sm:$0xff] %vm1043, %v1042
    // Predicated region
    $region58: #{_critic_forward.1} parent=1 // pred_check
      _
    $region59: #{_critic_forward.1} parent=1 // pred_check_branch
      %1046 = sbr.rel (0) target = $region61
    $region60: #{_critic_forward.1} parent=1 // pred_region
      _
    $region61: #{_critic_forward.1} parent=1 // pred_fallthru
      _
    // Predicated region
    $region62: #{_critic_forward.1} parent=1 // pred_check
      _
    $region63: #{_critic_forward.1} parent=1 // pred_check_branch
      %1048 = sbr.rel (0) target = $region65
    $region64: #{_critic_forward.1} parent=1 // pred_region
      _
    $region65: #{_critic_forward.1} parent=1 // pred_fallthru
      _
    %1049 = vsyncpa [#allocation4], 1
    %1050 = vsyncpa [#allocation6], 1
    %1051 = vsyncpa [#allocation9], 1

</llo_original>
